<compile_context>
chip_gen: v6e
topology: v6e:2x2x1
jax: 0.10.0
libtpu: 0.0.40
codegen_flags: <defaults>
</compile_context>

<pallas_src>
import functools

import jax
import jax.numpy as jnp
import numpy as np
from jax.experimental import pallas as pl
from jax.experimental.pallas import tpu as pltpu

_LANE = 128
_SUBLANE = 8


def _round_up(n, m):
    return ((n + m - 1) // m) * m


def _mlp_fused_kernel(*refs, num_layers):
    """refs = (x_ref, w0_ref, b0_ref, w1_ref, b1_ref, ..., o_ref).

    Fused per row tile: [matmul (MXU, f32 acc) -> bias -> ELU] x num_layers.
    Weight-norm scaling is already folded into the weights by the wrapper.
    """
    x_ref, o_ref = refs[0], refs[-1]
    h = x_ref[...]
    for l in range(num_layers):
        w = refs[1 + 2 * l][...]                       # (Din_l, Dout_l), resident
        b = refs[2 + 2 * l][...]                       # (1, Dout_l), f32
        y = jnp.dot(h.astype(w.dtype), w,
                    preferred_element_type=jnp.float32)
        y = y + b
        # ELU (alpha=1). Clamp exp arg so the discarded positive branch stays finite.
        h = jnp.where(y > 0.0, y, jnp.exp(jnp.minimum(y, 0.0)) - 1.0)
    o_ref[...] = h.astype(o_ref.dtype)


def mlp_forward(x, params, *, compute_dtype=jnp.float32, row_tile=1024,
                vmem_limit_bytes=None):
    """x: (..., dims[0]) -> (..., dims[-1]).

    params: list of (v (Dout, Din), g (1,), b (Dout,)) in PyTorch layout.
    compute_dtype: dtype of the matmul inputs (f32 or bf16); accumulation and
    the bias/ELU epilogue are always f32.
    row_tile: rows per grid step.  Budget ~ 2 (dbl-buf) * TR * (Din+Dout) *
    itemsize + weights of VMEM; the 1024 default is a few hundred KB here and
    fits every generation (v7x has only 64 MiB physical VMEM - keep TR modest
    or pass vmem_limit_bytes explicitly for much wider MLPs).
    """
    num_layers = len(params)
    lead = x.shape[:-1]
    din0 = x.shape[-1]
    dout_last = params[-1][0].shape[0]

    # Flatten leading dims; pad rows to a sublane multiple for legal blocks.
    x2d = x.reshape(-1, din0).astype(compute_dtype)
    r = x2d.shape[0]
    r_pad = _round_up(max(r, 1), _SUBLANE)
    if r_pad != r:
        x2d = jnp.pad(x2d, ((0, r_pad - r), (0, 0)))
    tr = min(_round_up(row_tile, _SUBLANE), r_pad)
    grid = (pl.cdiv(r_pad, tr),)

    kern_args = [x2d]
    in_specs = [pl.BlockSpec((tr, din0), lambda i: (i, 0))]
    for l, (v, g, b) in enumerate(params):
        dout, din = v.shape
        # weight_norm(dim=None): scalar Frobenius-norm scale, folded into the
        # (tiny) weight here -- one small XLA reduce per layer, none in-kernel.
        scale = g[0] / jnp.sqrt(jnp.sum(v.astype(jnp.float32) ** 2))
        w = (scale * v).T                              # (Din, Dout), pre-transposed
        # Pad only *internal* feature dims to lane multiples (exact, see header).
        din_p = din if l == 0 else _round_up(din, _LANE)
        dout_p = dout if l == num_layers - 1 else _round_up(dout, _LANE)
        w = jnp.pad(w, ((0, din_p - din), (0, dout_p - dout))).astype(compute_dtype)
        b2 = jnp.pad(b, (0, dout_p - dout)).reshape(1, dout_p).astype(jnp.float32)
        kern_args += [w, b2]
        in_specs += [pl.BlockSpec((din_p, dout_p), lambda i: (0, 0)),  # resident
                     pl.BlockSpec((1, dout_p), lambda i: (0, 0))]      # resident

    out = pl.pallas_call(
        functools.partial(_mlp_fused_kernel, num_layers=num_layers),
        out_shape=jax.ShapeDtypeStruct((r_pad, dout_last), jnp.float32),
        grid=grid,
        in_specs=in_specs,
        out_specs=pl.BlockSpec((tr, dout_last), lambda i: (i, 0)),
        compiler_params=pltpu.CompilerParams(
            dimension_semantics=("parallel",),          # lets v7x use both TCs
            vmem_limit_bytes=vmem_limit_bytes),
    )(*kern_args)

    return out[:r].reshape(*lead, dout_last)


def init_mlp_params(key, dims):
    """Deterministic init matching nn.Linear + weight_norm(dim=None) at t=0."""
    params = []
    for i in range(len(dims) - 1):
        in_dim, out_dim = dims[i], dims[i + 1]
        key, kw, kb = jax.random.split(key, 3)
        bound = 1.0 / np.sqrt(in_dim)
        v = jax.random.uniform(kw, (out_dim, in_dim), jnp.float32, -bound, bound)
        b = jax.random.uniform(kb, (out_dim,), jnp.float32, -bound, bound)
        g = jnp.linalg.norm(v).reshape(1)              # weight_norm init: g = ||v||_F
        params.append((v, g, b))
    return params


def _mlp_reference(x, params):
    """Pure-JAX reference for correctness checking (PyTorch layout)."""
    h = x
    for (v, g, b) in params:
        w = (g[0] / jnp.linalg.norm(v)) * v
        h = h @ w.T + b
        h = jnp.where(h > 0.0, h, jnp.exp(h) - 1.0)
    return h


if __name__ == "__main__":
    key = jax.random.PRNGKey(0)
    dims = [32, 64, 32]                                # MLP(dims=[32, 64, 32], act='ELU')
    kx, kp = jax.random.split(key)
    x = jax.random.normal(kx, (2, 8, dims[0]), jnp.float32)   # [batch, seq, hidden]
    params = init_mlp_params(kp, dims)

    fwd_f32 = jax.jit(functools.partial(mlp_forward, compute_dtype=jnp.float32))
    fwd_bf16 = jax.jit(functools.partial(mlp_forward, compute_dtype=jnp.bfloat16))

    out_f32 = jax.block_until_ready(fwd_f32(x, params))
    out_bf16 = jax.block_until_ready(fwd_bf16(x, params))
    ref = jax.block_until_ready(_mlp_reference(x, params))

    assert out_f32.shape == (2, 8, dims[-1]), out_f32.shape
    assert out_bf16.shape == (2, 8, dims[-1]), out_bf16.shape
    np.testing.assert_allclose(np.asarray(out_f32), np.asarray(ref),
                               rtol=1e-5, atol=1e-5)
    np.testing.assert_allclose(np.asarray(out_bf16), np.asarray(ref),
                               rtol=2e-2, atol=2e-2)
    print("KERNEL_OK")
</pallas_src>

<mosaic_0001>
module attributes {stable_mosaic.version = 11 : i64} {
  func.func @_mlp_fused_kernel(%arg0: i32, %arg1: memref<16x32xf32, #tpu.memory_space<vmem>>, %arg2: memref<32x128xf32, #tpu.memory_space<vmem>>, %arg3: memref<1x128xf32, #tpu.memory_space<vmem>>, %arg4: memref<128x32xf32, #tpu.memory_space<vmem>>, %arg5: memref<1x32xf32, #tpu.memory_space<vmem>>, %arg6: memref<16x32xf32, #tpu.memory_space<vmem>>) attributes {dimension_semantics = [#tpu.dimension_semantics<parallel>], iteration_bounds = array<i64: 1>, scalar_prefetch = 0 : i64, scratch_operands = 0 : i64, tpu.core_type = #tpu.core_type<tc>, window_params = [{transform_indices = @transform_0, window_bounds = array<i64: 16, 32>}, {pipeline_mode = #tpu.pipeline_mode<synchronous>, transform_indices = @transform_1, window_bounds = array<i64: 32, 128>}, {pipeline_mode = #tpu.pipeline_mode<synchronous>, transform_indices = @transform_2, window_bounds = array<i64: 1, 128>}, {pipeline_mode = #tpu.pipeline_mode<synchronous>, transform_indices = @transform_3, window_bounds = array<i64: 128, 32>}, {pipeline_mode = #tpu.pipeline_mode<synchronous>, transform_indices = @transform_4, window_bounds = array<i64: 1, 32>}, {transform_indices = @transform_5, window_bounds = array<i64: 16, 32>}]} {
    %c0 = arith.constant 0 : index
    %c0_0 = arith.constant 0 : index
    %0 = vector.load %arg1[%c0, %c0_0] : memref<16x32xf32, #tpu.memory_space<vmem>>, vector<16x32xf32>
    %c0_1 = arith.constant 0 : index
    %c0_2 = arith.constant 0 : index
    %1 = vector.load %arg2[%c0_1, %c0_2] : memref<32x128xf32, #tpu.memory_space<vmem>>, vector<32x128xf32>
    %c0_3 = arith.constant 0 : index
    %c0_4 = arith.constant 0 : index
    %2 = vector.load %arg3[%c0_3, %c0_4] : memref<1x128xf32, #tpu.memory_space<vmem>>, vector<1x128xf32>
    %cst = arith.constant dense<0.000000e+00> : vector<16x128xf32>
    %3 = tpu.matmul %0, %1, %cst {dimension_numbers = #tpu.dot_dimension_numbers<[1], [0], [0], [1], [0, 0, 1, 1], [], []>} : vector<16x32xf32>, vector<32x128xf32>, vector<16x128xf32> -> vector<16x128xf32>
    %4 = vector.broadcast %2 : vector<1x128xf32> to vector<16x128xf32>
    %5 = arith.addf %3, %4 : vector<16x128xf32>
    %cst_5 = arith.constant 0.000000e+00 : f32
    %6 = vector.broadcast %cst_5 : f32 to vector<16x128xf32>
    %7 = arith.cmpf ogt, %5, %6 : vector<16x128xf32>
    %cst_6 = arith.constant 0.000000e+00 : f32
    %8 = vector.broadcast %cst_6 : f32 to vector<16x128xf32>
    %9 = arith.minimumf %5, %8 : vector<16x128xf32>
    %10 = math.exp %9 : vector<16x128xf32>
    %cst_7 = arith.constant 1.000000e+00 : f32
    %11 = vector.broadcast %cst_7 : f32 to vector<16x128xf32>
    %12 = arith.subf %10, %11 : vector<16x128xf32>
    %13 = arith.select %7, %5, %12 : vector<16x128xi1>, vector<16x128xf32>
    %c0_8 = arith.constant 0 : index
    %c0_9 = arith.constant 0 : index
    %14 = vector.load %arg4[%c0_8, %c0_9] : memref<128x32xf32, #tpu.memory_space<vmem>>, vector<128x32xf32>
    %c0_10 = arith.constant 0 : index
    %c0_11 = arith.constant 0 : index
    %15 = vector.load %arg5[%c0_10, %c0_11] : memref<1x32xf32, #tpu.memory_space<vmem>>, vector<1x32xf32>
    %cst_12 = arith.constant dense<0.000000e+00> : vector<16x32xf32>
    %16 = tpu.matmul %13, %14, %cst_12 {dimension_numbers = #tpu.dot_dimension_numbers<[1], [0], [0], [1], [0, 0, 1, 1], [], []>} : vector<16x128xf32>, vector<128x32xf32>, vector<16x32xf32> -> vector<16x32xf32>
    %17 = vector.broadcast %15 : vector<1x32xf32> to vector<16x32xf32>
    %18 = arith.addf %16, %17 : vector<16x32xf32>
    %cst_13 = arith.constant 0.000000e+00 : f32
    %19 = vector.broadcast %cst_13 : f32 to vector<16x32xf32>
    %20 = arith.cmpf ogt, %18, %19 : vector<16x32xf32>
    %cst_14 = arith.constant 0.000000e+00 : f32
    %21 = vector.broadcast %cst_14 : f32 to vector<16x32xf32>
    %22 = arith.minimumf %18, %21 : vector<16x32xf32>
    %23 = math.exp %22 : vector<16x32xf32>
    %cst_15 = arith.constant 1.000000e+00 : f32
    %24 = vector.broadcast %cst_15 : f32 to vector<16x32xf32>
    %25 = arith.subf %23, %24 : vector<16x32xf32>
    %26 = arith.select %20, %18, %25 : vector<16x32xi1>, vector<16x32xf32>
    %c0_16 = arith.constant 0 : index
    %c0_17 = arith.constant 0 : index
    %27 = vector.load %arg6[%c0_16, %c0_17] : memref<16x32xf32, #tpu.memory_space<vmem>>, vector<16x32xf32>
    tpu.vector_store %arg6[%c0_16, %c0_17], %26 {strides = array<i32>} : memref<16x32xf32, #tpu.memory_space<vmem>>, vector<16x32xf32>,
    return
  }
  func.func @transform_0(%arg0: i32) -> (i32, i32) {
    %c0_i32 = arith.constant 0 : i32
    %c0_i32_0 = arith.constant 0 : i32
    return %arg0, %c0_i32 : i32, i32
  }
  func.func @transform_1(%arg0: i32) -> (i32, i32) {
    %c0_i32 = arith.constant 0 : i32
    %c0_i32_0 = arith.constant 0 : i32
    %c0_i32_1 = arith.constant 0 : i32
    return %c0_i32, %c0_i32_0 : i32, i32
  }
  func.func @transform_2(%arg0: i32) -> (i32, i32) {
    %c0_i32 = arith.constant 0 : i32
    %c0_i32_0 = arith.constant 0 : i32
    %c0_i32_1 = arith.constant 0 : i32
    return %c0_i32, %c0_i32_0 : i32, i32
  }
  func.func @transform_3(%arg0: i32) -> (i32, i32) {
    %c0_i32 = arith.constant 0 : i32
    %c0_i32_0 = arith.constant 0 : i32
    %c0_i32_1 = arith.constant 0 : i32
    return %c0_i32, %c0_i32_0 : i32, i32
  }
  func.func @transform_4(%arg0: i32) -> (i32, i32) {
    %c0_i32 = arith.constant 0 : i32
    %c0_i32_0 = arith.constant 0 : i32
    %c0_i32_1 = arith.constant 0 : i32
    return %c0_i32, %c0_i32_0 : i32, i32
  }
  func.func @transform_5(%arg0: i32) -> (i32, i32) {
    %c0_i32 = arith.constant 0 : i32
    %c0_i32_0 = arith.constant 0 : i32
    return %arg0, %c0_i32 : i32, i32
  }
}

</mosaic_0001>

<llo_original>
// kernel: mlp_forward.1
$region0: #{mlp_forward.1}
  #allocation0 [shape = 'u32[]', space=smem, size = 0x4, offset = 0x4, fixed_abs, tag = 'smem constant byte address 0x4 - core index']
  #allocation1 [shape = 'u32[144,128]{1,0:T(1,128)}', space=vmem, size = 0x12000, scoped, tag = 'internal scratch']
  %s0 = inlined_call_operand.vmem [shape: f32[16,32], index: 0, kind: input, shape index: {}]
  %s1 = inlined_call_operand.vmem [shape: f32[32,128], index: 1, kind: input, shape index: {}]
  %s2 = inlined_call_operand.vmem [shape: f32[1,128], index: 2, kind: input, shape index: {}]
  %s3 = inlined_call_operand.vmem [shape: f32[128,32], index: 3, kind: input, shape index: {}]
  %s4 = inlined_call_operand.vmem [shape: f32[1,32], index: 4, kind: input, shape index: {}]
  %s5 = inlined_call_operand.hbm [shape: f32[16,32], index: 5, kind: output, shape index: {}]
  %s6 = sld [smem:[#allocation0]]
  $region30: #{mlp_forward.1} parent=0
    _
  %s8 = ssub.s32 1, %s6
  %s9 = scalar_select 0, %s8, %s6
  $region1: #{mlp_forward.1} parent=0
    #allocation2 [shape = 'u8[8192]{0}', space=vmem, size = 0x2000, scoped, tag = 'output window, operand 0, single buffered']
    #allocation3 [shape = 's32[1]{0}', space=sflag, size = 0x4, scoped, tag = 'scoped memory for mlp_forward.1']
    %10 = vsyncpa [#allocation3], 0
    // Predicated region
    $region2: #{mlp_forward.1} parent=1 // pred_check
      _
    $region3: #{mlp_forward.1} parent=1 // pred_check_branch
      %12 = sbr.rel (0) target = $region5
    $region4: #{mlp_forward.1} parent=1 // pred_region
      _
    $region5: #{mlp_forward.1} parent=1 // pred_fallthru
      _
    // Predicated region
    $region6: #{mlp_forward.1} parent=1 // pred_check
      _
    $region7: #{mlp_forward.1} parent=1 // pred_check_branch
      %14 = sbr.rel (0) target = $region9
    $region8: #{mlp_forward.1} parent=1 // pred_region
      _
    $region9: #{mlp_forward.1} parent=1 // pred_fallthru
      _
    // Predicated region
    $region10: #{mlp_forward.1} parent=1 // pred_check
      _
    $region11: #{mlp_forward.1} parent=1 // pred_check_branch
      %16 = sbr.rel (0) target = $region13
    $region12: #{mlp_forward.1} parent=1 // pred_region
      _
    $region13: #{mlp_forward.1} parent=1 // pred_fallthru
      _
    // Predicated region
    $region14: #{mlp_forward.1} parent=1 // pred_check
      _
    $region15: #{mlp_forward.1} parent=1 // pred_check_branch
      %18 = sbr.rel (0) target = $region17
    $region16: #{mlp_forward.1} parent=1 // pred_region
      _
    $region17: #{mlp_forward.1} parent=1 // pred_fallthru
      _
    // Predicated region
    $region18: #{mlp_forward.1} parent=1 // pred_check
      _
    $region19: #{mlp_forward.1} parent=1 // pred_check_branch
      %20 = sbr.rel (0) target = $region21
    $region20: #{mlp_forward.1} parent=1 // pred_region
      _
    $region21: #{mlp_forward.1} parent=1 // pred_fallthru
      _
    %v21 = vld [vmem:[%s0] sm:$0xff]
    %v22 = vld [vmem:[%s0 + $0x8] sm:$0xff]
    %v23 = vld [vmem:[%s1] sm:$0xff]
    %v24 = vld [vmem:[%s1 + $0x8] sm:$0xff]
    %v25 = vld [vmem:[%s1 + $0x10] sm:$0xff]
    %v26 = vld [vmem:[%s1 + $0x18] sm:$0xff]
    %v27 = vld [vmem:[%s2] sm:$0x1]
    %v29 = vlaneseq
    %v30 = vshrl.u32 %v29, 7
    %v31 = vsub.s32 0, %v30
    %v32 = vrot.slane %v27, %v31
    %vm34 = vcmask 261120
    %v36 = vsel %vm34, %v21, 0
    %v39 = vsel %vm34, %v22, 0
    %41 = vmatprep.subr.mxu0 0.0
    %42 = vmatpush1.msra.mxu0 0.0
    %43 = vmatprep.subr.mxu0 0.0
    %44 = vmatpush1.msra.mxu0 0.0
    %45 = vmatprep.subr.mxu0 0.0
    %46 = vmatpush1.msra.mxu0 0.0
    %47 = vmatprep.subr.mxu0 0.0
    %48 = vmatpush1.msra.mxu0 0.0
    %49 = vmatprep.subr.mxu0 0.0
    %50 = vmatpush1.msra.mxu0 0.0
    %51 = vmatprep.subr.mxu0 0.0
    %52 = vmatpush1.msra.mxu0 0.0
    %53 = vmatprep.subr.mxu0 0.0
    %54 = vmatpush1.msra.mxu0 0.0
    %55 = vmatprep.subr.mxu0 0.0
    %56 = vmatpush1.msra.mxu0 0.0
    %57 = vmatprep.subr.mxu0 0.0
    %58 = vmatpush1.msra.mxu0 0.0
    %59 = vmatprep.subr.mxu0 0.0
    %60 = vmatpush1.msra.mxu0 0.0
    %61 = vmatprep.subr.mxu0 0.0
    %62 = vmatpush1.msra.mxu0 0.0
    %63 = vmatprep.subr.mxu0 0.0
    %64 = vmatpush1.msra.mxu0 0.0
    %65 = vmatprep.subr.mxu0 0.0
    %66 = vmatpush1.msra.mxu0 %v26
    %67 = vmatprep.subr.mxu0 0.0
    %68 = vmatpush1.msra.mxu0 %v25
    %69 = vmatprep.subr.mxu0 0.0
    %70 = vmatpush1.msra.mxu0 %v24
    %71 = vmatprep.subr.mxu0 0.0
    %72 = vmatpush1.msra.mxu0 %v23
    %73 = vmatprep.subr.mxu0 0.0
    %74 = vmatpush2.msra.mxu0 0.0
    %75 = vmatprep.subr.mxu0 0.0
    %76 = vmatpush2.msra.mxu0 0.0
    %77 = vmatprep.subr.mxu0 0.0
    %78 = vmatpush2.msra.mxu0 0.0
    %79 = vmatprep.subr.mxu0 0.0
    %80 = vmatpush2.msra.mxu0 0.0
    %81 = vmatprep.subr.mxu0 0.0
    %82 = vmatpush2.msra.mxu0 0.0
    %83 = vmatprep.subr.mxu0 0.0
    %84 = vmatpush2.msra.mxu0 0.0
    %85 = vmatprep.subr.mxu0 0.0
    %86 = vmatpush2.msra.mxu0 0.0
    %87 = vmatprep.subr.mxu0 0.0
    %88 = vmatpush2.msra.mxu0 0.0
    %89 = vmatprep.subr.mxu0 0.0
    %90 = vmatpush2.msra.mxu0 0.0
    %91 = vmatprep.subr.mxu0 0.0
    %92 = vmatpush2.msra.mxu0 0.0
    %93 = vmatprep.subr.mxu0 0.0
    %94 = vmatpush2.msra.mxu0 0.0
    %95 = vmatprep.subr.mxu0 0.0
    %96 = vmatpush2.msra.mxu0 0.0
    %97 = vmatprep.subr.mxu0 0.0
    %98 = vmatpush2.msra.mxu0 0.0
    %99 = vmatprep.subr.mxu0 0.0
    %100 = vmatpush2.msra.mxu0 0.0
    %101 = vmatprep.subr.mxu0 0.0
    %102 = vmatpush2.msra.mxu0 0.0
    %103 = vmatprep.subr.mxu0 0.0
    %104 = vmatpush2.msra.mxu0 0.0
    %105 = vmatprep.mubr.f32.mxu0 0.0
    %106 = vmatmul.mubr.f32.gmra.mxu0 %v36
    %v107 = vpop.f32.mrf.mxu0
    %v108 = vadd.f32 %v32, %v107
    %v109 = vpop.f32.mrf.mxu0
    %110 = vmatprep.mubr.f32.mxu0 0.0
    %111 = vmatmul.mubr.f32.gmra.mxu0 %v39
    %v112 = vpop.f32.mrf.mxu0
    %v113 = vadd.f32 %v32, %v112
    %v114 = vpop.f32.mrf.mxu0
    %115 = vdwg.mxu0
    %vm116 = vcmp.gt.f32.partialorder %v108, 0.0
    %vm117 = vcmp.gt.f32.partialorder %v113, 0.0
    %v118 = vmin.f32 %v108, 0.0
    %v119 = vmin.f32 %v113, 0.0
    %v120 = vmul.f32 %v118, 1.442695
    %v121 = vpow.pop %v120
    %v122 = vmul.f32 %v119, 1.442695
    %v123 = vpow.pop %v122
    %v124 = vsub.f32 %v121, 1.0
    %v125 = vsub.f32 %v123, 1.0
    %v126 = vsel %vm116, %v108, %v124
    %v127 = vsel %vm117, %v113, %v125
    %v128 = vld [vmem:[%s3] sm:$0xff]
    %v129 = vld [vmem:[%s3 + $0x8] sm:$0xff]
    %v130 = vld [vmem:[%s3 + $0x10] sm:$0xff]
    %v131 = vld [vmem:[%s3 + $0x18] sm:$0xff]
    %v132 = vld [vmem:[%s3 + $0x20] sm:$0xff]
    %v133 = vld [vmem:[%s3 + $0x28] sm:$0xff]
    %v134 = vld [vmem:[%s3 + $0x30] sm:$0xff]
    %v135 = vld [vmem:[%s3 + $0x38] sm:$0xff]
    %v136 = vld [vmem:[%s3 + $0x40] sm:$0xff]
    %v137 = vld [vmem:[%s3 + $0x48] sm:$0xff]
    %v138 = vld [vmem:[%s3 + $0x50] sm:$0xff]
    %v139 = vld [vmem:[%s3 + $0x58] sm:$0xff]
    %v140 = vld [vmem:[%s3 + $0x60] sm:$0xff]
    %v141 = vld [vmem:[%s3 + $0x68] sm:$0xff]
    %v142 = vld [vmem:[%s3 + $0x70] sm:$0xff]
    %v143 = vld [vmem:[%s3 + $0x78] sm:$0xff]
    %v144 = vld [vmem:[%s4] sm:$0x1]
    %v146 = vlaneseq
    %v147 = vshrl.u32 %v146, 7
    %v148 = vsub.s32 0, %v147
    %v149 = vrot.slane %v144, %v148
    %151 = vmatprep.subr.mxu0 0.0
    %152 = vmatpush1.msra.mxu0 %v143
    %153 = vmatprep.subr.mxu0 0.0
    %154 = vmatpush1.msra.mxu0 %v142
    %155 = vmatprep.subr.mxu0 0.0
    %156 = vmatpush1.msra.mxu0 %v141
    %157 = vmatprep.subr.mxu0 0.0
    %158 = vmatpush1.msra.mxu0 %v140
    %159 = vmatprep.subr.mxu0 0.0
    %160 = vmatpush1.msra.mxu0 %v139
    %161 = vmatprep.subr.mxu0 0.0
    %162 = vmatpush1.msra.mxu0 %v138
    %163 = vmatprep.subr.mxu0 0.0
    %164 = vmatpush1.msra.mxu0 %v137
    %165 = vmatprep.subr.mxu0 0.0
    %166 = vmatpush1.msra.mxu0 %v136
    %167 = vmatprep.subr.mxu0 0.0
    %168 = vmatpush1.msra.mxu0 %v135
    %169 = vmatprep.subr.mxu0 0.0
    %170 = vmatpush1.msra.mxu0 %v134
    %171 = vmatprep.subr.mxu0 0.0
    %172 = vmatpush1.msra.mxu0 %v133
    %173 = vmatprep.subr.mxu0 0.0
    %174 = vmatpush1.msra.mxu0 %v132
    %175 = vmatprep.subr.mxu0 0.0
    %176 = vmatpush1.msra.mxu0 %v131
    %177 = vmatprep.subr.mxu0 0.0
    %178 = vmatpush1.msra.mxu0 %v130
    %179 = vmatprep.subr.mxu0 0.0
    %180 = vmatpush1.msra.mxu0 %v129
    %181 = vmatprep.subr.mxu0 0.0
    %182 = vmatpush1.msra.mxu0 %v128
    %183 = vmatprep.subr.mxu0 0.0
    %184 = vmatpush2.msra.mxu0 0.0
    %185 = vmatprep.subr.mxu0 0.0
    %186 = vmatpush2.msra.mxu0 0.0
    %187 = vmatprep.subr.mxu0 0.0
    %188 = vmatpush2.msra.mxu0 0.0
    %189 = vmatprep.subr.mxu0 0.0
    %190 = vmatpush2.msra.mxu0 0.0
    %191 = vmatprep.subr.mxu0 0.0
    %192 = vmatpush2.msra.mxu0 0.0
    %193 = vmatprep.subr.mxu0 0.0
    %194 = vmatpush2.msra.mxu0 0.0
    %195 = vmatprep.subr.mxu0 0.0
    %196 = vmatpush2.msra.mxu0 0.0
    %197 = vmatprep.subr.mxu0 0.0
    %198 = vmatpush2.msra.mxu0 0.0
    %199 = vmatprep.subr.mxu0 0.0
    %200 = vmatpush2.msra.mxu0 0.0
    %201 = vmatprep.subr.mxu0 0.0
    %202 = vmatpush2.msra.mxu0 0.0
    %203 = vmatprep.subr.mxu0 0.0
    %204 = vmatpush2.msra.mxu0 0.0
    %205 = vmatprep.subr.mxu0 0.0
    %206 = vmatpush2.msra.mxu0 0.0
    %207 = vmatprep.subr.mxu0 0.0
    %208 = vmatpush2.msra.mxu0 0.0
    %209 = vmatprep.subr.mxu0 0.0
    %210 = vmatpush2.msra.mxu0 0.0
    %211 = vmatprep.subr.mxu0 0.0
    %212 = vmatpush2.msra.mxu0 0.0
    %213 = vmatprep.subr.mxu0 0.0
    %214 = vmatpush2.msra.mxu0 0.0
    %215 = vmatprep.mubr.f32.mxu0 0.0
    %216 = vmatmul.mubr.f32.gmra.mxu0 %v126
    %v217 = vpop.f32.mrf.mxu0
    %v218 = vadd.f32 %v149, %v217
    %v219 = vpop.f32.mrf.mxu0
    %220 = vmatprep.mubr.f32.mxu0 0.0
    %221 = vmatmul.mubr.f32.gmra.mxu0 %v127
    %v222 = vpop.f32.mrf.mxu0
    %v223 = vadd.f32 %v149, %v222
    %v224 = vpop.f32.mrf.mxu0
    %225 = vdwg.mxu0
    %vm226 = vcmp.gt.f32.partialorder %v218, 0.0
    %vm227 = vcmp.gt.f32.partialorder %v223, 0.0
    %v228 = vmin.f32 %v218, 0.0
    %v229 = vmin.f32 %v223, 0.0
    %v230 = vmul.f32 %v228, 1.442695
    %v231 = vpow.pop %v230
    %v232 = vmul.f32 %v229, 1.442695
    %v233 = vpow.pop %v232
    %v234 = vsub.f32 %v231, 1.0
    %v235 = vsub.f32 %v233, 1.0
    %v236 = vsel %vm226, %v218, %v234
    %v237 = vsel %vm227, %v223, %v235
    %238 = vst.msk [vmem:[#allocation2] sm:$0xff] %vm34, %v236
    %239 = vst.msk [vmem:[#allocation2 + $0x8] sm:$0xff] %vm34, %v237
    // Predicated region
    $region22: #{mlp_forward.1} parent=1 // pred_check
      _
    $region23: #{mlp_forward.1} parent=1 // pred_check_branch
      %241 = sbr.rel (0) target = $region25
    $region24: #{mlp_forward.1} parent=1 // pred_region
      %s243 = ssub.s32 256, 256
      %244 = vsyncadd [#allocation3], %s243
      %s245 = sshll.u32 [#allocation2], 4
      %s246 = int_to_ptr.vmem [resolvable:$true] %s245
      %251 = dma.vmem_to_hbm [thread:$0]  %s246, 256, %s5, [#allocation3], 128, 128, 8
    $region25: #{mlp_forward.1} parent=1 // pred_fallthru
      _
    // Predicated region
    $region26: #{mlp_forward.1} parent=1 // pred_check
      _
    $region27: #{mlp_forward.1} parent=1 // pred_check_branch
      %253 = sbr.rel (0) target = $region29
    $region28: #{mlp_forward.1} parent=1 // pred_region
      %254 = dma.done [#allocation3], 256
    $region29: #{mlp_forward.1} parent=1 // pred_fallthru
      _
    %255 = vsyncpa [#allocation3], 1

</llo_original>
